<compile_context>
chip_gen: v7x
topology: tpu7x:2x2x1
jax: 0.10.0
libtpu: 0.0.40
codegen_flags: <defaults>
</compile_context>

<pallas_src>
import jax
import jax.numpy as jnp
from jax import lax
from jax.experimental import pallas as pl
from jax.experimental.pallas import tpu as pltpu


def _nll_loss_kernel(pred_ref, tgt_ref, w_ref, out_ref, num_acc, den_acc):
    # pred_ref: (TR, L) log-probs, L = G*Cp (lane-dense, L multiple of 128)
    # tgt_ref:  (TR, G) int32 packed targets (-1 = padding row)
    # w_ref:    (1, L) f32 per-lane class weights (weight[l % Cp])
    # out_ref:  (1, 1) f32 final loss
    # num_acc/den_acc: (1, 1) f32 VMEM scratch accumulators (persist over grid)
    step = pl.program_id(0)

    @pl.when(step == 0)
    def _init():
        num_acc[...] = jnp.zeros_like(num_acc)
        den_acc[...] = jnp.zeros_like(den_acc)

    pred = pred_ref[...].astype(jnp.float32)            # cast after load (bf16 ok)
    tgt = tgt_ref[...]                                   # (TR, G) int32
    w_b = jnp.broadcast_to(w_ref[...], pred.shape)       # (TR, L)

    tr, L = pred.shape
    G = tgt.shape[1]
    cp = L // G

    if G == 1:
        # Class dim already spans the whole lane axis (C > 128 case).
        t_exp = jnp.broadcast_to(tgt.astype(jnp.float32), (tr, L))
        cls = lax.broadcasted_iota(jnp.int32, (tr, L), 1).astype(jnp.float32)
    else:
        # cp is a power of two by construction.  Expand each packed target to
        # its cp-lane group with a tiny matmul on the idle MXU:
        #   E[g, l] = 1  iff  g*cp <= l < (g+1)*cp
        gi = lax.broadcasted_iota(jnp.int32, (G, L), 0)
        li = lax.broadcasted_iota(jnp.int32, (G, L), 1)
        expand = ((li >= gi * cp) & (li < (gi + 1) * cp)).astype(jnp.float32)
        t_exp = jnp.dot(tgt.astype(jnp.float32), expand,
                        preferred_element_type=jnp.float32)   # (TR, L) exact ints
        cls = (lax.broadcasted_iota(jnp.int32, (tr, L), 1) & (cp - 1)
               ).astype(jnp.float32)                           # lane class = l % cp

    onehot = t_exp == cls                                  # (TR, L) bool
    sel_p = jnp.where(onehot, pred, 0.0)                   # avoids 0 * (-inf) = NaN
    sel_w = jnp.where(onehot, w_b, 0.0)                    # weight[target] per sample

    num_acc[...] += jnp.sum(sel_p * w_b, keepdims=True)    # sum_n w[t_n]*logp[t_n]
    den_acc[...] += jnp.sum(sel_w, keepdims=True)          # sum_n w[t_n]

    @pl.when(step == pl.num_programs(0) - 1)
    def _finalize():
        out_ref[...] = -num_acc[...] / den_acc[...]


def _round_up(x, m):
    return (x + m - 1) // m * m


def get_loss(pred, target, trans_feat=None, weight=None):
    """JAX/Pallas equivalent of the PyTorch get_loss.forward.

    pred:   (N, C) float (f32 or bf16) log-probabilities
    target: (N,)   int class indices (assumed valid, in [0, C))
    trans_feat: unused (signature parity)
    weight: (C,)   float per-class weights (defaults to ones)
    """
    n, c = pred.shape
    if weight is None:
        weight = jnp.ones((c,), dtype=jnp.float32)
    weight = weight.astype(jnp.float32)
    target = target.astype(jnp.int32)

    # ---- lane packing parameters -------------------------------------------
    if c <= 128:
        cp = 1 << max(0, (c - 1).bit_length())   # next pow2 >= c (divides 128)
        g = 128 // cp                            # samples folded per 128-lane row
        L = 128
    else:
        cp = _round_up(c, 128)
        g = 1
        L = cp

    if cp != c:  # pad class dim (padded classes have weight 0, never selected)
        pred = jnp.pad(pred, ((0, 0), (0, cp - c)))
        weight = jnp.pad(weight, (0, cp - c))

    # ---- row tiling over the reduction axis --------------------------------
    rows = -(-n // g)
    rows_pad = _round_up(rows, 8)
    tr = 8
    for cand in (2048, 1024, 512, 256, 128, 64, 32, 16, 8):
        if rows_pad % cand == 0:
            tr = cand
            break
    # keep double-buffered pred tiles small enough for v7x's 64 MiB VMEM
    while tr > 8 and tr * L * 4 > 4 * 1024 * 1024 and rows_pad % (tr // 2) == 0:
        tr //= 2

    n_pad = rows_pad * g
    if n_pad != n:
        pred = jnp.pad(pred, ((0, n_pad - n), (0, 0)))
        # padded samples get target -1: never match a class -> contribute 0/0
        target = jnp.pad(target, (0, n_pad - n), constant_values=-1)

    pred_packed = pred.reshape(rows_pad, L)          # free row-major reshape
    tgt_packed = target.reshape(rows_pad, g)         # packed targets (no (N,1) block)
    w_lane = jnp.tile(weight, g).reshape(1, L)       # w_lane[l] = weight[l % cp]

    grid = (rows_pad // tr,)

    out = pl.pallas_call(
        _nll_loss_kernel,
        out_shape=jax.ShapeDtypeStruct((1, 1), jnp.float32),
        grid=grid,
        in_specs=[
            pl.BlockSpec((tr, L), lambda r: (r, 0)),   # pred tiles (lane-dense)
            pl.BlockSpec((tr, g), lambda r: (r, 0)),   # packed targets
            pl.BlockSpec((1, L), lambda r: (0, 0)),    # per-lane weights (constant)
        ],
        out_specs=pl.BlockSpec((1, 1), lambda r: (0, 0)),
        scratch_shapes=[
            pltpu.VMEM((1, 1), jnp.float32),           # numerator accumulator
            pltpu.VMEM((1, 1), jnp.float32),           # denominator accumulator
        ],
        compiler_params=pltpu.CompilerParams(
            dimension_semantics=("arbitrary",)),       # sequential reduction axis
    )(pred_packed, tgt_packed, w_lane)
    return out[0, 0]


if __name__ == "__main__":
    key = jax.random.PRNGKey(0)
    k1, k2, k3, k4, k5 = jax.random.split(key, 5)

    # ---- Test 1: small shape, single grid step, row padding path -----------
    N, C = 32, 8
    logits = jax.random.normal(k1, (N, C), dtype=jnp.float32)
    pred = jax.nn.log_softmax(logits, axis=-1)
    target = jax.random.randint(k2, (N,), 0, C, dtype=jnp.int32)
    weight = jax.random.uniform(k3, (C,), dtype=jnp.float32, minval=0.5, maxval=1.5)
    trans_feat = jnp.zeros((2, 4, 4), dtype=jnp.float32)   # unused, parity only

    loss = get_loss(pred, target, trans_feat, weight)
    jax.block_until_ready(loss)

    sel_logp = pred[jnp.arange(N), target]
    sel_w = weight[target]
    ref = -jnp.sum(sel_w * sel_logp) / jnp.sum(sel_w)
    assert jnp.allclose(loss, ref, rtol=1e-5, atol=1e-5), (loss, ref)

    # ---- Test 2: multi-step grid + -inf log-prob hazard ---------------------
    N2 = 384  # rows = 24 -> tile 8 rows, 3 grid steps
    logits2 = jax.random.normal(k4, (N2, C), dtype=jnp.float32)
    pred2 = jax.nn.log_softmax(logits2, axis=-1)
    pred2 = pred2.at[:, 0].set(-jnp.inf)                    # never-selected class
    target2 = jax.random.randint(k5, (N2,), 1, C, dtype=jnp.int32)

    loss2 = get_loss(pred2, target2, None, weight)
    jax.block_until_ready(loss2)

    sel_logp2 = pred2[jnp.arange(N2), target2]
    sel_w2 = weight[target2]
    ref2 = -jnp.sum(sel_w2 * sel_logp2) / jnp.sum(sel_w2)
    assert not jnp.isnan(loss2), loss2
    assert jnp.allclose(loss2, ref2, rtol=1e-5, atol=1e-5), (loss2, ref2)

    print("KERNEL_OK")
</pallas_src>

<mosaic_0001>
module attributes {stable_mosaic.version = 11 : i64} {
  func.func @_nll_loss_kernel(%arg0: i32, %arg1: memref<8x128xf32, #tpu.memory_space<vmem>>, %arg2: memref<8x16xi32, #tpu.memory_space<vmem>>, %arg3: memref<1x128xf32, #tpu.memory_space<vmem>>, %arg4: memref<1x1xf32, #tpu.memory_space<vmem>>, %arg5: memref<1x1xf32, #tpu.memory_space<vmem>>, %arg6: memref<1x1xf32, #tpu.memory_space<vmem>>) attributes {dimension_semantics = [#tpu.dimension_semantics<arbitrary>], iteration_bounds = array<i64: 1>, scalar_prefetch = 0 : i64, scratch_operands = 2 : i64, tpu.core_type = #tpu.core_type<tc>, window_params = [{transform_indices = @transform_0, window_bounds = array<i64: 8, 128>}, {transform_indices = @transform_1, window_bounds = array<i64: 8, 16>}, {pipeline_mode = #tpu.pipeline_mode<synchronous>, transform_indices = @transform_2, window_bounds = array<i64: 1, 128>}, {pipeline_mode = #tpu.pipeline_mode<synchronous>, transform_indices = @transform_3, window_bounds = array<i64: 1, 1>}]} {
    %c0_i32 = arith.constant 0 : i32
    %0 = arith.cmpi eq, %arg0, %c0_i32 : i32
    %1 = arith.extui %0 : i1 to i32
    %c0_i32_0 = arith.constant 0 : i32
    %2 = arith.cmpi ne, %1, %c0_i32_0 : i32
    scf.if %2 {
      %cst_21 = arith.constant 0.000000e+00 : f32
      %52 = vector.broadcast %cst_21 : f32 to vector<1x1xf32>
      %c0_22 = arith.constant 0 : index
      %c0_23 = arith.constant 0 : index
      %53 = vector.load %arg5[%c0_22, %c0_23] : memref<1x1xf32, #tpu.memory_space<vmem>>, vector<1x1xf32>
      tpu.vector_store %arg5[%c0_22, %c0_23], %52 {strides = array<i32>} : memref<1x1xf32, #tpu.memory_space<vmem>>, vector<1x1xf32>,
      %cst_24 = arith.constant 0.000000e+00 : f32
      %54 = vector.broadcast %cst_24 : f32 to vector<1x1xf32>
      %c0_25 = arith.constant 0 : index
      %c0_26 = arith.constant 0 : index
      %55 = vector.load %arg6[%c0_25, %c0_26] : memref<1x1xf32, #tpu.memory_space<vmem>>, vector<1x1xf32>
      tpu.vector_store %arg6[%c0_25, %c0_26], %54 {strides = array<i32>} : memref<1x1xf32, #tpu.memory_space<vmem>>, vector<1x1xf32>,
    } else {
    }
    %c0 = arith.constant 0 : index
    %c0_1 = arith.constant 0 : index
    %3 = vector.load %arg1[%c0, %c0_1] : memref<8x128xf32, #tpu.memory_space<vmem>>, vector<8x128xf32>
    %c0_2 = arith.constant 0 : index
    %c0_3 = arith.constant 0 : index
    %4 = vector.load %arg2[%c0_2, %c0_3] : memref<8x16xi32, #tpu.memory_space<vmem>>, vector<8x16xi32>
    %c0_4 = arith.constant 0 : index
    %c0_5 = arith.constant 0 : index
    %5 = vector.load %arg3[%c0_4, %c0_5] : memref<1x128xf32, #tpu.memory_space<vmem>>, vector<1x128xf32>
    %6 = vector.shape_cast %5 : vector<1x128xf32> to vector<1x128xf32>
    %7 = vector.broadcast %6 : vector<1x128xf32> to vector<8x128xf32>
    %8 = tpu.iota {dimensions = array<i32: 0>} : vector<16x128xi32>
    %9 = tpu.iota {dimensions = array<i32: 1>} : vector<16x128xi32>
    %c8_i32 = arith.constant 8 : i32
    %10 = vector.broadcast %c8_i32 : i32 to vector<16x128xi32>
    %11 = arith.muli %8, %10 : vector<16x128xi32>
    %12 = arith.cmpi sge, %9, %11 : vector<16x128xi32>
    %c1_i32 = arith.constant 1 : i32
    %13 = vector.broadcast %c1_i32 : i32 to vector<16x128xi32>
    %14 = arith.addi %8, %13 : vector<16x128xi32>
    %c8_i32_6 = arith.constant 8 : i32
    %15 = vector.broadcast %c8_i32_6 : i32 to vector<16x128xi32>
    %16 = arith.muli %14, %15 : vector<16x128xi32>
    %17 = arith.cmpi slt, %9, %16 : vector<16x128xi32>
    %18 = arith.andi %12, %17 : vector<16x128xi1>
    %19 = arith.extui %18 : vector<16x128xi1> to vector<16x128xi32>
    %20 = arith.sitofp %19 : vector<16x128xi32> to vector<16x128xf32>
    %21 = arith.sitofp %4 : vector<8x16xi32> to vector<8x16xf32>
    %cst = arith.constant dense<0.000000e+00> : vector<8x128xf32>
    %22 = tpu.matmul %21, %20, %cst {dimension_numbers = #tpu.dot_dimension_numbers<[1], [0], [0], [1], [0, 0, 1, 1], [], []>} : vector<8x16xf32>, vector<16x128xf32>, vector<8x128xf32> -> vector<8x128xf32>
    %23 = tpu.iota {dimensions = array<i32: 1>} : vector<8x128xi32>
    %c7_i32 = arith.constant 7 : i32
    %24 = vector.broadcast %c7_i32 : i32 to vector<8x128xi32>
    %25 = arith.andi %23, %24 : vector<8x128xi32>
    %26 = arith.sitofp %25 : vector<8x128xi32> to vector<8x128xf32>
    %27 = arith.cmpf oeq, %22, %26 : vector<8x128xf32>
    %cst_7 = arith.constant 0.000000e+00 : f32
    %28 = vector.broadcast %cst_7 : f32 to vector<8x128xf32>
    %29 = arith.select %27, %3, %28 : vector<8x128xi1>, vector<8x128xf32>
    %cst_8 = arith.constant 0.000000e+00 : f32
    %30 = vector.broadcast %cst_8 : f32 to vector<8x128xf32>
    %31 = arith.select %27, %7, %30 : vector<8x128xi1>, vector<8x128xf32>
    %c0_9 = arith.constant 0 : index
    %c0_10 = arith.constant 0 : index
    %32 = vector.load %arg5[%c0_9, %c0_10] : memref<1x1xf32, #tpu.memory_space<vmem>>, vector<1x1xf32>
    %33 = arith.mulf %29, %7 : vector<8x128xf32>
    %34 = vector.shape_cast %33 : vector<8x128xf32> to vector<1x8x128xf32>
    %cst_11 = arith.constant dense<0.000000e+00> : vector<1xf32>
    %35 = vector.multi_reduction <add>, %34, %cst_11 [1, 2] : vector<1x8x128xf32> to vector<1xf32>
    %36 = vector.shape_cast %35 : vector<1xf32> to vector<1x1x1xf32>
    %37 = vector.extract %36[0, 0, 0] : f32 from vector<1x1x1xf32>
    %38 = vector.broadcast %37 : f32 to vector<1x1xf32>
    %39 = arith.addf %32, %38 : vector<1x1xf32>
    %c0_12 = arith.constant 0 : index
    %c0_13 = arith.constant 0 : index
    %40 = vector.load %arg5[%c0_12, %c0_13] : memref<1x1xf32, #tpu.memory_space<vmem>>, vector<1x1xf32>
    tpu.vector_store %arg5[%c0_12, %c0_13], %39 {strides = array<i32>} : memref<1x1xf32, #tpu.memory_space<vmem>>, vector<1x1xf32>,
    %c0_14 = arith.constant 0 : index
    %c0_15 = arith.constant 0 : index
    %41 = vector.load %arg6[%c0_14, %c0_15] : memref<1x1xf32, #tpu.memory_space<vmem>>, vector<1x1xf32>
    %42 = vector.shape_cast %31 : vector<8x128xf32> to vector<1x8x128xf32>
    %cst_16 = arith.constant dense<0.000000e+00> : vector<1xf32>
    %43 = vector.multi_reduction <add>, %42, %cst_16 [1, 2] : vector<1x8x128xf32> to vector<1xf32>
    %44 = vector.shape_cast %43 : vector<1xf32> to vector<1x1x1xf32>
    %45 = vector.extract %44[0, 0, 0] : f32 from vector<1x1x1xf32>
    %46 = vector.broadcast %45 : f32 to vector<1x1xf32>
    %47 = arith.addf %41, %46 : vector<1x1xf32>
    %c0_17 = arith.constant 0 : index
    %c0_18 = arith.constant 0 : index
    %48 = vector.load %arg6[%c0_17, %c0_18] : memref<1x1xf32, #tpu.memory_space<vmem>>, vector<1x1xf32>
    tpu.vector_store %arg6[%c0_17, %c0_18], %47 {strides = array<i32>} : memref<1x1xf32, #tpu.memory_space<vmem>>, vector<1x1xf32>,
    %c0_i32_19 = arith.constant 0 : i32
    %49 = arith.cmpi eq, %arg0, %c0_i32_19 : i32
    %50 = arith.extui %49 : i1 to i32
    %c0_i32_20 = arith.constant 0 : i32
    %51 = arith.cmpi ne, %50, %c0_i32_20 : i32
    scf.if %51 {
      %c0_21 = arith.constant 0 : index
      %c0_22 = arith.constant 0 : index
      %52 = vector.load %arg5[%c0_21, %c0_22] : memref<1x1xf32, #tpu.memory_space<vmem>>, vector<1x1xf32>
      %cst_23 = arith.constant 0.000000e+00 : f32
      %53 = vector.broadcast %cst_23 : f32 to vector<1x1xf32>
      %54 = arith.subf %53, %52 : vector<1x1xf32>
      %c0_24 = arith.constant 0 : index
      %c0_25 = arith.constant 0 : index
      %55 = vector.load %arg6[%c0_24, %c0_25] : memref<1x1xf32, #tpu.memory_space<vmem>>, vector<1x1xf32>
      %56 = arith.divf %54, %55 : vector<1x1xf32>
      %c0_26 = arith.constant 0 : index
      %c0_27 = arith.constant 0 : index
      %57 = vector.load %arg4[%c0_26, %c0_27] : memref<1x1xf32, #tpu.memory_space<vmem>>, vector<1x1xf32>
      tpu.vector_store %arg4[%c0_26, %c0_27], %56 {strides = array<i32>} : memref<1x1xf32, #tpu.memory_space<vmem>>, vector<1x1xf32>,
    } else {
    }
    return
  }
  func.func @transform_0(%arg0: i32) -> (i32, i32) {
    %c0_i32 = arith.constant 0 : i32
    %c0_i32_0 = arith.constant 0 : i32
    return %arg0, %c0_i32 : i32, i32
  }
  func.func @transform_1(%arg0: i32) -> (i32, i32) {
    %c0_i32 = arith.constant 0 : i32
    %c0_i32_0 = arith.constant 0 : i32
    return %arg0, %c0_i32 : i32, i32
  }
  func.func @transform_2(%arg0: i32) -> (i32, i32) {
    %c0_i32 = arith.constant 0 : i32
    %c0_i32_0 = arith.constant 0 : i32
    %c0_i32_1 = arith.constant 0 : i32
    return %c0_i32, %c0_i32_0 : i32, i32
  }
  func.func @transform_3(%arg0: i32) -> (i32, i32) {
    %c0_i32 = arith.constant 0 : i32
    %c0_i32_0 = arith.constant 0 : i32
    %c0_i32_1 = arith.constant 0 : i32
    return %c0_i32, %c0_i32_0 : i32, i32
  }
}

</mosaic_0001>

<llo_original>
// kernel: tpu_custom_call.1
$region0: #{tpu_custom_call.1}
  #allocation0 [shape = 'u32[]', space=smem, size = 0x4, offset = 0x4, fixed_abs, tag = 'smem constant byte address 0x4 - core index']
  #allocation1 [shape = 'u32[144,128]{1,0:T(1,128)}', space=vmem, size = 0x12000, scoped, tag = 'internal scratch']
  #allocation2 [shape = 'f32[1,1]{1,0:T(1,128)}', space=vmem, size = 0x200, scoped, tag = 'scratch operand']
  #allocation3 [shape = 'f32[1,1]{1,0:T(1,128)}', space=vmem, size = 0x200, scoped, tag = 'scratch operand']
  %s0 = inlined_call_operand.hbm [shape: f32[8,128], index: 0, kind: input, shape index: {}]
  %s1 = inlined_call_operand.hbm [shape: s32[8,16], index: 1, kind: input, shape index: {}]
  %s2 = inlined_call_operand.vmem [shape: f32[1,128], index: 2, kind: input, shape index: {}]
  %s3 = inlined_call_operand.hbm [shape: f32[1,1], index: 3, kind: output, shape index: {}]
  %s4 = sld [smem:[#allocation0]]
  $region38: #{tpu_custom_call.1} parent=0
    _
  %s6 = ssub.s32 1, %s4
  %s7 = scalar_select 0, %s6, %s4
  $region1: #{tpu_custom_call.1} parent=0
    #allocation4 [shape = 'u8[4096]{0}', space=vmem, size = 0x1000, scoped, tag = 'input window, operand 0, single buffered']
    #allocation5 [shape = 's32[1]{0}', space=sflag, size = 0x4, scoped, tag = 'scoped memory for tpu_custom_call.1']
    #allocation6 [shape = 's32[1]{0}', space=sflag, size = 0x4, scoped, tag = 'scoped memory for tpu_custom_call.1']
    #allocation7 [shape = 'u8[4096]{0}', space=vmem, size = 0x1000, scoped, tag = 'input window, operand 1, single buffered']
    #allocation8 [shape = 's32[1]{0}', space=sflag, size = 0x4, scoped, tag = 'scoped memory for tpu_custom_call.1']
    #allocation9 [shape = 'u8[512]{0}', space=vmem, size = 0x400, scoped, tag = 'output window, operand 0, single buffered']
    %8 = vsyncpa [#allocation5], 0
    %9 = vsyncpa [#allocation8], 0
    %10 = vsyncpa [#allocation6], 0
    // Predicated region
    $region2: #{tpu_custom_call.1} parent=1 // pred_check
      _
    $region3: #{tpu_custom_call.1} parent=1 // pred_check_branch
      %12 = sbr.rel (0) target = $region5
    $region4: #{tpu_custom_call.1} parent=1 // pred_region
      %s14 = ssub.s32 128, 128
      %15 = vsyncadd [#allocation5], %s14
      %s17 = sshll.u32 [#allocation4], 4
      %s18 = int_to_ptr.vmem [resolvable:$true] %s17
      %20 = dma.hbm_to_vmem [thread:$0]  %s0, 128, %s18, [#allocation5]
    $region5: #{tpu_custom_call.1} parent=1 // pred_fallthru
      _
    // Predicated region
    $region6: #{tpu_custom_call.1} parent=1 // pred_check
      _
    $region7: #{tpu_custom_call.1} parent=1 // pred_check_branch
      %22 = sbr.rel (0) target = $region9
    $region8: #{tpu_custom_call.1} parent=1 // pred_region
      %s24 = ssub.s32 128, 128
      %25 = vsyncadd [#allocation8], %s24
      %s27 = sshll.u32 [#allocation7], 4
      %s28 = int_to_ptr.vmem [resolvable:$true] %s27
      %30 = dma.hbm_to_vmem [thread:$0]  %s1, 128, %s28, [#allocation8]
    $region9: #{tpu_custom_call.1} parent=1 // pred_fallthru
      _
    // Predicated region
    $region10: #{tpu_custom_call.1} parent=1 // pred_check
      _
    $region11: #{tpu_custom_call.1} parent=1 // pred_check_branch
      %32 = sbr.rel (0) target = $region13
    $region12: #{tpu_custom_call.1} parent=1 // pred_region
      _
    $region13: #{tpu_custom_call.1} parent=1 // pred_fallthru
      _
    // Predicated region
    $region14: #{tpu_custom_call.1} parent=1 // pred_check
      _
    $region15: #{tpu_custom_call.1} parent=1 // pred_check_branch
      %34 = sbr.rel (0) target = $region17
    $region16: #{tpu_custom_call.1} parent=1 // pred_region
      %35 = dma.done [#allocation5], 128
    $region17: #{tpu_custom_call.1} parent=1 // pred_fallthru
      _
    // Predicated region
    $region18: #{tpu_custom_call.1} parent=1 // pred_check
      _
    $region19: #{tpu_custom_call.1} parent=1 // pred_check_branch
      %37 = sbr.rel (0) target = $region21
    $region20: #{tpu_custom_call.1} parent=1 // pred_region
      %38 = dma.done [#allocation8], 128
    $region21: #{tpu_custom_call.1} parent=1 // pred_fallthru
      _
    %p39 = scmp.eq.s32.totalorder 0, 0
    // Predicated region
    $region22: #{tpu_custom_call.1} parent=1 // pred_check
      %p40 = pneg %p39
    $region23: #{tpu_custom_call.1} parent=1 // pred_check_branch
      %42 = sbr.rel (%p40) target = $region25
    $region24: #{tpu_custom_call.1} parent=1 // pred_region
      %vm43 = vcmask 0
      %44 = vst.msk [vmem:[#allocation2] sm:$0x1] %vm43, 0.0
      %45 = vst.msk [vmem:[#allocation3] sm:$0x1] %vm43, 0.0
    $region25: #{tpu_custom_call.1} parent=1 // pred_fallthru
      _
    %v46 = vld [vmem:[#allocation4] sm:$0xff]
    %v47 = vld [vmem:[#allocation7] sm:$0xff]
    %v48 = vld [vmem:[%s2] sm:$0x1]
    %v50 = vlaneseq
    %v51 = vshrl.u32 %v50, 7
    %v52 = vsub.s32 0, %v51
    %v53 = vrot.slane %v48, %v52
    %v55 = vlaneseq
    %v56 = vshrl.u32 %v55, 7
    %v57 = vadd.s32 %v56, 8
    %v58 = vlaneseq
    %v59 = vand.u32 %v58, 127
    %v60 = vmul.u32 %v56, 8
    %v61 = vmul.u32 %v57, 8
    %vm62 = vcmp.ge.s32.totalorder %v59, %v60
    %vm63 = vcmp.ge.s32.totalorder %v59, %v61
    %v64 = vadd.s32 %v56, 1
    %v65 = vadd.s32 %v57, 1
    %v66 = vmul.u32 %v64, 8
    %v67 = vmul.u32 %v65, 8
    %vm68 = vcmp.lt.s32.totalorder %v59, %v66
    %vm69 = vcmp.lt.s32.totalorder %v59, %v67
    %vm70 = vmand %vm62, %vm68
    %vm71 = vmand %vm63, %vm69
    %v72 = vsel %vm70, 1, 0
    %v73 = vsel %vm71, 1, 0
    %v74 = vcvt.s32.f32 %v72
    %v75 = vcvt.s32.f32 %v73
    %v76 = vcvt.s32.f32 %v47
    %vm77 = vcmask 130048
    %v79 = vsel %vm77, %v76, 0
    %81 = vmatprep.subr.mxu0 0.0
    %82 = vmatpush1.msra.mxu0 %v74
    %83 = vmatprep.subr.mxu0 0.0
    %84 = vmatpush1.msra.mxu0 %v75
    %85 = vmatprep.subr.mxu0 0.0
    %86 = vmatpush1.msra.mxu0 0.0
    %87 = vmatprep.subr.mxu0 0.0
    %88 = vmatpush1.msra.mxu0 0.0
    %89 = vmatprep.subr.mxu0 0.0
    %90 = vmatpush1.msra.mxu0 0.0
    %91 = vmatprep.subr.mxu0 0.0
    %92 = vmatpush1.msra.mxu0 0.0
    %93 = vmatprep.subr.mxu0 0.0
    %94 = vmatpush1.msra.mxu0 0.0
    %95 = vmatprep.subr.mxu0 0.0
    %96 = vmatpush1.msra.mxu0 0.0
    %97 = vmatprep.subr.mxu0 0.0
    %98 = vmatpush1.msra.mxu0 0.0
    %99 = vmatprep.subr.mxu0 0.0
    %100 = vmatpush1.msra.mxu0 0.0
    %101 = vmatprep.subr.mxu0 0.0
    %102 = vmatpush1.msra.mxu0 0.0
    %103 = vmatprep.subr.mxu0 0.0
    %104 = vmatpush1.msra.mxu0 0.0
    %105 = vmatprep.subr.mxu0 0.0
    %106 = vmatpush1.msra.mxu0 0.0
    %107 = vmatprep.subr.mxu0 0.0
    %108 = vmatpush1.msra.mxu0 0.0
    %109 = vmatprep.subr.mxu0 0.0
    %110 = vmatpush1.msra.mxu0 0.0
    %111 = vmatprep.subr.mxu0 0.0
    %112 = vmatpush1.msra.mxu0 0.0
    %113 = vmatprep.subr.mxu0 0.0
    %114 = vmatpush1.msra.mxu0 0.0
    %115 = vmatprep.subr.mxu0 0.0
    %116 = vmatpush1.msra.mxu0 0.0
    %117 = vmatprep.subr.mxu0 0.0
    %118 = vmatpush1.msra.mxu0 0.0
    %119 = vmatprep.subr.mxu0 0.0
    %120 = vmatpush1.msra.mxu0 0.0
    %121 = vmatprep.subr.mxu0 0.0
    %122 = vmatpush1.msra.mxu0 0.0
    %123 = vmatprep.subr.mxu0 0.0
    %124 = vmatpush1.msra.mxu0 0.0
    %125 = vmatprep.subr.mxu0 0.0
    %126 = vmatpush1.msra.mxu0 0.0
    %127 = vmatprep.subr.mxu0 0.0
    %128 = vmatpush1.msra.mxu0 0.0
    %129 = vmatprep.subr.mxu0 0.0
    %130 = vmatpush1.msra.mxu0 0.0
    %131 = vmatprep.subr.mxu0 0.0
    %132 = vmatpush1.msra.mxu0 0.0
    %133 = vmatprep.subr.mxu0 0.0
    %134 = vmatpush1.msra.mxu0 0.0
    %135 = vmatprep.subr.mxu0 0.0
    %136 = vmatpush1.msra.mxu0 0.0
    %137 = vmatprep.subr.mxu0 0.0
    %138 = vmatpush1.msra.mxu0 0.0
    %139 = vmatprep.subr.mxu0 0.0
    %140 = vmatpush1.msra.mxu0 0.0
    %141 = vmatprep.subr.mxu0 0.0
    %142 = vmatpush1.msra.mxu0 0.0
    %143 = vmatprep.subr.mxu0 0.0
    %144 = vmatpush1.msra.mxu0 0.0
    %145 = vmatprep.mubr.f32.mxu0 0.0
    %146 = vmatmul.mubr.f32.gmra.mrb[0].mxu0 %v79
    %v147 = vpop.f32.mrb[0].mxu0
    %v148 = vadd.f32 0.0, %v147
    %v149 = vpop.f32.mrb[0].mxu0
    %150 = vdwg.mxu0
    %v151 = vand.u32 %v59, 7
    %v152 = vcvt.s32.f32 %v151
    %vm153 = vcmp.eq.f32.partialorder %v148, %v152
    %v154 = vsel %vm153, %v46, 0.0
    %v155 = vsel %vm153, %v53, 0.0
    %v156 = vld [vmem:[#allocation2] sm:$0x1]
    %v157 = vmul.f32 %v154, %v53
    %158 = vadd.xlane.f32.xlu0 %v157
    %v159 = vpop.xlane.xlu0 %158
    %v160 = vrot.slane %v159, 4
    %v161 = vadd.f32 %v159, %v160
    %v162 = vrot.slane %v161, 2
    %v163 = vadd.f32 %v161, %v162
    %v164 = vrot.slane %v163, 1
    %v165 = vadd.f32 %v163, %v164
    %s166 = vtos %v165
    %v167 = vstv %s166
    %v168 = vadd.f32 %v156, %v167
    %vm169 = vcmask 0
    %170 = vst.msk [vmem:[#allocation2] sm:$0x1] %vm169, %v168
    %v171 = vld [vmem:[#allocation3] sm:$0x1]
    %172 = vadd.xlane.f32.xlu0 %v155
    %v173 = vpop.xlane.xlu0 %172
    %v174 = vrot.slane %v173, 4
    %v175 = vadd.f32 %v173, %v174
    %v176 = vrot.slane %v175, 2
    %v177 = vadd.f32 %v175, %v176
    %v178 = vrot.slane %v177, 1
    %v179 = vadd.f32 %v177, %v178
    %s180 = vtos %v179
    %v181 = vstv %s180
    %v182 = vadd.f32 %v171, %v181
    %183 = vst.msk [vmem:[#allocation3] sm:$0x1] %vm169, %v182
    // Predicated region
    $region26: #{tpu_custom_call.1} parent=1 // pred_check
      %p184 = pneg %p39
    $region27: #{tpu_custom_call.1} parent=1 // pred_check_branch
      %186 = sbr.rel (%p184) target = $region29
    $region28: #{tpu_custom_call.1} parent=1 // pred_region
      %v187 = vld [vmem:[#allocation2] sm:$0x1]
      %v188 = vsub.f32 0.0, %v187
      %v189 = vld [vmem:[#allocation3] sm:$0x1]
      %v190 = vrcp.pop %v189
      %v191 = vmul.f32 %v188, %v190
      %192 = vst.msk [vmem:[#allocation9] sm:$0x1] %vm169, %v191
    $region29: #{tpu_custom_call.1} parent=1 // pred_fallthru
      _
    // Predicated region
    $region30: #{tpu_custom_call.1} parent=1 // pred_check
      _
    $region31: #{tpu_custom_call.1} parent=1 // pred_check_branch
      %194 = sbr.rel (0) target = $region33
    $region32: #{tpu_custom_call.1} parent=1 // pred_region
      %s196 = ssub.s32 16, 16
      %197 = vsyncadd [#allocation6], %s196
      %s199 = sshll.u32 [#allocation9], 4
      %s200 = int_to_ptr.vmem [resolvable:$true] %s199
      %202 = dma.vmem_to_hbm [thread:$0]  %s200, 16, %s3, [#allocation6]
    $region33: #{tpu_custom_call.1} parent=1 // pred_fallthru
      _
    // Predicated region
    $region34: #{tpu_custom_call.1} parent=1 // pred_check
      _
    $region35: #{tpu_custom_call.1} parent=1 // pred_check_branch
      %204 = sbr.rel (0) target = $region37
    $region36: #{tpu_custom_call.1} parent=1 // pred_region
      %205 = dma.done [#allocation6], 16
    $region37: #{tpu_custom_call.1} parent=1 // pred_fallthru
      _
    %206 = vsyncpa [#allocation5], 1
    %207 = vsyncpa [#allocation8], 1
    %208 = vsyncpa [#allocation6], 1

</llo_original>
